<compile_context>
chip_gen: v7x
topology: tpu7x:2x2x1
jax: 0.10.0
libtpu: 0.0.40
codegen_flags: <defaults>
</compile_context>

<pallas_src>
import jax
import jax.numpy as jnp
from jax.experimental import pallas as pl
from jax.experimental.pallas import tpu as pltpu

# Layer sizes
IN_F = 405
H1 = 256
H2 = 128
HEAD = 64
N_ACT = 5
QOUT = 8                      # fused output width: cols 0:5 = Q, cols 5:8 zero

# Offsets inside the packed bias row
_B1_OFF = 0
_B2_OFF = _B1_OFF + H1        # 256
_BH1_OFF = _B2_OFF + H2       # 384
_BQ_OFF = _BH1_OFF + 2 * HEAD  # 512
_BIAS_LEN = _BQ_OFF + QOUT    # 520

MAX_BATCH_TILE = 1024


def dueling_qnet_kernel(x_ref, w1_ref, w2_ref, wh1_ref, wq_ref, bias_ref, q_ref):
    b1 = bias_ref[:, _B1_OFF:_B2_OFF]       # (1, 256)
    b2 = bias_ref[:, _B2_OFF:_BH1_OFF]      # (1, 128)
    bh1 = bias_ref[:, _BH1_OFF:_BQ_OFF]     # (1, 128)
    bq = bias_ref[:, _BQ_OFF:_BIAS_LEN]     # (1, 8)

    x = x_ref[...].astype(jnp.bfloat16)                                # (TB, 405)

    # Trunk: Linear(405,256) -> ReLU -> Linear(256,128) -> ReLU
    h = jnp.dot(x, w1_ref[...], preferred_element_type=jnp.float32) + b1
    h = jnp.maximum(h, 0.0)
    h = jnp.dot(h.astype(jnp.bfloat16), w2_ref[...],
                preferred_element_type=jnp.float32) + b2
    h = jnp.maximum(h, 0.0)                                            # (TB, 128)

    # Fused head layer 1: cols 0:64 value stream, cols 64:128 advantage stream
    h1 = jnp.dot(h.astype(jnp.bfloat16), wh1_ref[...],
                 preferred_element_type=jnp.float32) + bh1
    h1 = jnp.maximum(h1, 0.0)                                          # (TB, 128)

    # Fused head layer 2 with the dueling combine folded into the weights:
    # cols 0:5 are already Q = v + (a - mean(a)); cols 5:8 zero padding.
    q = jnp.dot(h1.astype(jnp.bfloat16), wq_ref[...],
                preferred_element_type=jnp.float32) + bq               # (TB, 8)
    q_ref[...] = q.astype(q_ref.dtype)


def init_params(key):
    """PyTorch nn.Linear-style init: U(-1/sqrt(fan_in), 1/sqrt(fan_in)), f32."""
    dims = [
        ("w1", (IN_F, H1)), ("b1", (1, H1)),
        ("w2", (H1, H2)),   ("b2", (1, H2)),
        ("wv1", (H2, HEAD)), ("bv1", (1, HEAD)),
        ("wv2", (HEAD, 1)),  ("bv2", (1, 1)),
        ("wa1", (H2, HEAD)), ("ba1", (1, HEAD)),
        ("wa2", (HEAD, N_ACT)), ("ba2", (1, N_ACT)),
    ]
    fan_in = {"w1": IN_F, "b1": IN_F, "w2": H1, "b2": H1,
              "wv1": H2, "bv1": H2, "wv2": HEAD, "bv2": HEAD,
              "wa1": H2, "ba1": H2, "wa2": HEAD, "ba2": HEAD}
    params = {}
    keys = jax.random.split(key, len(dims))
    for (name, shape), k in zip(dims, keys):
        bound = 1.0 / jnp.sqrt(jnp.float32(fan_in[name]))
        params[name] = jax.random.uniform(
            k, shape, dtype=jnp.float32, minval=-bound, maxval=bound)
    return params


def prepare_params(params):
    """Fuse / fold / pack the PyTorch-style params into the kernel layout."""
    f32, bf16 = jnp.float32, jnp.bfloat16

    w1 = params["w1"].astype(bf16)                                    # (405, 256)
    w2 = params["w2"].astype(bf16)                                    # (256, 128)

    # Fused head layer 1: [wv1 | wa1] -> (128, 128)
    wh1 = jnp.concatenate([params["wv1"], params["wa1"]], axis=1).astype(bf16)

    # Fused head layer 2 with the dueling combine folded in (mean is linear):
    #   q_j = hv @ wv2 + ha @ (wa2_j - mean_k wa2_k) + (bv2 + ba2_j - mean(ba2))
    centering = jnp.eye(N_ACT, dtype=f32) - jnp.full((N_ACT, N_ACT), 1.0 / N_ACT, f32)
    wa2_centered = params["wa2"] @ centering                          # (64, 5)
    wv2_broadcast = jnp.broadcast_to(params["wv2"], (HEAD, N_ACT))    # (64, 5)
    wq = jnp.zeros((2 * HEAD, QOUT), f32)
    wq = wq.at[:HEAD, :N_ACT].set(wv2_broadcast)
    wq = wq.at[HEAD:, :N_ACT].set(wa2_centered)
    wq = wq.astype(bf16)

    bq5 = params["ba2"] - jnp.mean(params["ba2"]) + params["bv2"][0, 0]   # (1, 5)

    # Packed f32 biases.
    bias = jnp.zeros((1, _BIAS_LEN), f32)
    bias = bias.at[:, _B1_OFF:_B2_OFF].set(params["b1"])
    bias = bias.at[:, _B2_OFF:_BH1_OFF].set(params["b2"])
    bias = bias.at[:, _BH1_OFF:_BH1_OFF + HEAD].set(params["bv1"])
    bias = bias.at[:, _BH1_OFF + HEAD:_BQ_OFF].set(params["ba1"])
    bias = bias.at[:, _BQ_OFF:_BQ_OFF + N_ACT].set(bq5)

    return {"w1": w1, "w2": w2, "wh1": wh1, "wq": wq, "bias": bias}


def _choose_batch_tile(B):
    """Batch tile: full batch for tiny B; otherwise a multiple of 16 giving
    >= 2 grid steps (v7x megacore), capped at MAX_BATCH_TILE."""
    if B < 16:
        return B                      # single full-extent block
    half = (B + 1) // 2
    tb = ((half + 15) // 16) * 16
    return min(tb, MAX_BATCH_TILE)


@jax.jit
def dueling_qnet_forward(x, prep):
    # mimic PyTorch: if x.dim() == 1, unsqueeze to (1, 405)
    if x.ndim == 1:
        x = x[None, :]
    B = x.shape[0]
    TB = _choose_batch_tile(B)
    nb = pl.cdiv(B, TB)

    weight_bytes = sum(int(v.size) * v.dtype.itemsize for v in prep.values())
    flops = 2 * B * (IN_F * H1 + H1 * H2 + H2 * 2 * HEAD + 2 * HEAD * QOUT)
    bytes_accessed = B * (IN_F * x.dtype.itemsize + QOUT * 4) + weight_bytes

    q8 = pl.pallas_call(
        dueling_qnet_kernel,
        out_shape=jax.ShapeDtypeStruct((B, QOUT), jnp.float32),
        grid=(nb,),
        in_specs=[
            pl.BlockSpec((TB, IN_F), lambda i: (i, 0)),            # x tile (streamed)
            pl.BlockSpec((IN_F, H1), lambda i: (0, 0)),            # w1 (VMEM-resident)
            pl.BlockSpec((H1, H2), lambda i: (0, 0)),              # w2
            pl.BlockSpec((H2, 2 * HEAD), lambda i: (0, 0)),        # fused head-1 W
            pl.BlockSpec((2 * HEAD, QOUT), lambda i: (0, 0)),      # fused head-2 W (combine folded)
            pl.BlockSpec((1, _BIAS_LEN), lambda i: (0, 0)),        # packed biases
        ],
        out_specs=pl.BlockSpec((TB, QOUT), lambda i: (i, 0)),
        compiler_params=pltpu.CompilerParams(
            dimension_semantics=("parallel",)),
        cost_estimate=pl.CostEstimate(
            flops=flops, transcendentals=0, bytes_accessed=bytes_accessed),
    )(x, prep["w1"], prep["w2"], prep["wh1"], prep["wq"], prep["bias"])

    return q8[:, :N_ACT]


def reference_forward_f32(x, params):
    """Full-precision PyTorch-equivalent math."""
    if x.ndim == 1:
        x = x[None, :]
    h = jnp.maximum(x @ params["w1"] + params["b1"], 0.0)
    h = jnp.maximum(h @ params["w2"] + params["b2"], 0.0)
    v = jnp.maximum(h @ params["wv1"] + params["bv1"], 0.0)
    v = v @ params["wv2"] + params["bv2"]
    a = jnp.maximum(h @ params["wa1"] + params["ba1"], 0.0)
    a = a @ params["wa2"] + params["ba2"]
    return v + (a - jnp.mean(a, axis=1, keepdims=True))


def reference_forward_prepared(x, prep):
    """Plain-jnp mirror of the kernel math (bf16 operands, f32 accumulation,
    dueling combine folded into the last weight)."""
    if x.ndim == 1:
        x = x[None, :]
    bf = jnp.bfloat16
    dot = lambda a, b: jnp.dot(a.astype(bf), b, preferred_element_type=jnp.float32)
    bias = prep["bias"]
    h = jnp.maximum(dot(x, prep["w1"]) + bias[:, _B1_OFF:_B2_OFF], 0.0)
    h = jnp.maximum(dot(h, prep["w2"]) + bias[:, _B2_OFF:_BH1_OFF], 0.0)
    h1 = jnp.maximum(dot(h, prep["wh1"]) + bias[:, _BH1_OFF:_BQ_OFF], 0.0)
    q = dot(h1, prep["wq"]) + bias[:, _BQ_OFF:_BIAS_LEN]
    return q[:, :N_ACT]


if __name__ == "__main__":
    key = jax.random.PRNGKey(0)
    pkey, xkey = jax.random.split(key)
    params = init_params(pkey)
    prep = prepare_params(params)

    # Main small-batch test + a ragged multi-grid-step batch.
    for batch in (8, 37):
        x = jax.random.normal(jax.random.fold_in(xkey, batch), (batch, IN_F),
                              dtype=jnp.float32)
        q = jax.block_until_ready(dueling_qnet_forward(x, prep))
        assert q.shape == (batch, N_ACT), q.shape

        q_prep = reference_forward_prepared(x, prep)
        assert jnp.allclose(q, q_prep, atol=2e-3, rtol=2e-3), (
            f"B={batch}: max abs diff vs prepared-weight ref "
            f"{jnp.max(jnp.abs(q - q_prep))}")

        q_f32 = reference_forward_f32(x, params)
        assert jnp.allclose(q, q_f32, atol=2e-2, rtol=2e-2), (
            f"B={batch}: max abs diff vs f32 ref {jnp.max(jnp.abs(q - q_f32))}")

    # PyTorch-style single observation (1-D input -> unsqueeze).
    obs = jax.random.normal(jax.random.fold_in(xkey, 1), (IN_F,), dtype=jnp.float32)
    q1 = jax.block_until_ready(dueling_qnet_forward(obs, prep))
    assert q1.shape == (1, N_ACT), q1.shape
    q1_f32 = reference_forward_f32(obs, params)
    assert jnp.allclose(q1, q1_f32, atol=2e-2, rtol=2e-2), (
        f"obs: max abs diff vs f32 ref {jnp.max(jnp.abs(q1 - q1_f32))}")

    # TODO(synk): sample_action/action (epsilon-greedy + argmax on host) are
    # host-side control flow and are intentionally not part of the kernel.
    print("KERNEL_OK")
</pallas_src>

<mosaic_0001>
module attributes {stable_mosaic.version = 11 : i64} {
  func.func @dueling_qnet_kernel(%arg0: i32, %arg1: memref<8x405xf32, #tpu.memory_space<vmem>>, %arg2: memref<405x256xbf16, #tpu.memory_space<vmem>>, %arg3: memref<256x128xbf16, #tpu.memory_space<vmem>>, %arg4: memref<128x128xbf16, #tpu.memory_space<vmem>>, %arg5: memref<128x8xbf16, #tpu.memory_space<vmem>>, %arg6: memref<1x520xf32, #tpu.memory_space<vmem>>, %arg7: memref<8x8xf32, #tpu.memory_space<vmem>>) attributes {dimension_semantics = [#tpu.dimension_semantics<parallel>], iteration_bounds = array<i64: 1>, scalar_prefetch = 0 : i64, scratch_operands = 0 : i64, tpu.core_type = #tpu.core_type<tc>, window_params = [{transform_indices = @transform_0, window_bounds = array<i64: 8, 405>}, {pipeline_mode = #tpu.pipeline_mode<synchronous>, transform_indices = @transform_1, window_bounds = array<i64: 405, 256>}, {pipeline_mode = #tpu.pipeline_mode<synchronous>, transform_indices = @transform_2, window_bounds = array<i64: 256, 128>}, {pipeline_mode = #tpu.pipeline_mode<synchronous>, transform_indices = @transform_3, window_bounds = array<i64: 128, 128>}, {pipeline_mode = #tpu.pipeline_mode<synchronous>, transform_indices = @transform_4, window_bounds = array<i64: 128, 8>}, {pipeline_mode = #tpu.pipeline_mode<synchronous>, transform_indices = @transform_5, window_bounds = array<i64: 1, 520>}, {transform_indices = @transform_6, window_bounds = array<i64: 8, 8>}]} {
    %c0 = arith.constant 0 : index
    %c0_0 = arith.constant 0 : index
    %0 = vector.load %arg6[%c0, %c0_0] : memref<1x520xf32, #tpu.memory_space<vmem>>, vector<1x256xf32>
    %c0_1 = arith.constant 0 : index
    %c256 = arith.constant 256 : index
    %1 = vector.load %arg6[%c0_1, %c256] : memref<1x520xf32, #tpu.memory_space<vmem>>, vector<1x128xf32>
    %c0_2 = arith.constant 0 : index
    %c384 = arith.constant 384 : index
    %2 = vector.load %arg6[%c0_2, %c384] : memref<1x520xf32, #tpu.memory_space<vmem>>, vector<1x128xf32>
    %c0_3 = arith.constant 0 : index
    %c512 = arith.constant 512 : index
    %3 = vector.load %arg6[%c0_3, %c512] : memref<1x520xf32, #tpu.memory_space<vmem>>, vector<1x8xf32>
    %c0_4 = arith.constant 0 : index
    %c0_5 = arith.constant 0 : index
    %4 = vector.load %arg1[%c0_4, %c0_5] : memref<8x405xf32, #tpu.memory_space<vmem>>, vector<8x405xf32>
    %5 = arith.truncf %4 : vector<8x405xf32> to vector<8x405xbf16>
    %c0_6 = arith.constant 0 : index
    %c0_7 = arith.constant 0 : index
    %6 = vector.load %arg2[%c0_6, %c0_7] : memref<405x256xbf16, #tpu.memory_space<vmem>>, vector<405x256xbf16>
    %cst = arith.constant dense<0.000000e+00> : vector<8x256xf32>
    %7 = tpu.matmul %5, %6, %cst {dimension_numbers = #tpu.dot_dimension_numbers<[1], [0], [0], [1], [0, 0, 1, 1], [], []>} : vector<8x405xbf16>, vector<405x256xbf16>, vector<8x256xf32> -> vector<8x256xf32>
    %8 = vector.broadcast %0 : vector<1x256xf32> to vector<8x256xf32>
    %9 = arith.addf %7, %8 : vector<8x256xf32>
    %cst_8 = arith.constant 0.000000e+00 : f32
    %10 = vector.broadcast %cst_8 : f32 to vector<8x256xf32>
    %11 = arith.maximumf %9, %10 : vector<8x256xf32>
    %12 = arith.truncf %11 : vector<8x256xf32> to vector<8x256xbf16>
    %c0_9 = arith.constant 0 : index
    %c0_10 = arith.constant 0 : index
    %13 = vector.load %arg3[%c0_9, %c0_10] : memref<256x128xbf16, #tpu.memory_space<vmem>>, vector<256x128xbf16>
    %cst_11 = arith.constant dense<0.000000e+00> : vector<8x128xf32>
    %14 = tpu.matmul %12, %13, %cst_11 {dimension_numbers = #tpu.dot_dimension_numbers<[1], [0], [0], [1], [0, 0, 1, 1], [], []>} : vector<8x256xbf16>, vector<256x128xbf16>, vector<8x128xf32> -> vector<8x128xf32>
    %15 = vector.broadcast %1 : vector<1x128xf32> to vector<8x128xf32>
    %16 = arith.addf %14, %15 : vector<8x128xf32>
    %cst_12 = arith.constant 0.000000e+00 : f32
    %17 = vector.broadcast %cst_12 : f32 to vector<8x128xf32>
    %18 = arith.maximumf %16, %17 : vector<8x128xf32>
    %19 = arith.truncf %18 : vector<8x128xf32> to vector<8x128xbf16>
    %c0_13 = arith.constant 0 : index
    %c0_14 = arith.constant 0 : index
    %20 = vector.load %arg4[%c0_13, %c0_14] : memref<128x128xbf16, #tpu.memory_space<vmem>>, vector<128x128xbf16>
    %cst_15 = arith.constant dense<0.000000e+00> : vector<8x128xf32>
    %21 = tpu.matmul %19, %20, %cst_15 {dimension_numbers = #tpu.dot_dimension_numbers<[1], [0], [0], [1], [0, 0, 1, 1], [], []>} : vector<8x128xbf16>, vector<128x128xbf16>, vector<8x128xf32> -> vector<8x128xf32>
    %22 = vector.broadcast %2 : vector<1x128xf32> to vector<8x128xf32>
    %23 = arith.addf %21, %22 : vector<8x128xf32>
    %cst_16 = arith.constant 0.000000e+00 : f32
    %24 = vector.broadcast %cst_16 : f32 to vector<8x128xf32>
    %25 = arith.maximumf %23, %24 : vector<8x128xf32>
    %26 = arith.truncf %25 : vector<8x128xf32> to vector<8x128xbf16>
    %c0_17 = arith.constant 0 : index
    %c0_18 = arith.constant 0 : index
    %27 = vector.load %arg5[%c0_17, %c0_18] : memref<128x8xbf16, #tpu.memory_space<vmem>>, vector<128x8xbf16>
    %cst_19 = arith.constant dense<0.000000e+00> : vector<8x8xf32>
    %28 = tpu.matmul %26, %27, %cst_19 {dimension_numbers = #tpu.dot_dimension_numbers<[1], [0], [0], [1], [0, 0, 1, 1], [], []>} : vector<8x128xbf16>, vector<128x8xbf16>, vector<8x8xf32> -> vector<8x8xf32>
    %29 = vector.broadcast %3 : vector<1x8xf32> to vector<8x8xf32>
    %30 = arith.addf %28, %29 : vector<8x8xf32>
    %c0_20 = arith.constant 0 : index
    %c0_21 = arith.constant 0 : index
    %31 = vector.load %arg7[%c0_20, %c0_21] : memref<8x8xf32, #tpu.memory_space<vmem>>, vector<8x8xf32>
    tpu.vector_store %arg7[%c0_20, %c0_21], %30 {strides = array<i32>} : memref<8x8xf32, #tpu.memory_space<vmem>>, vector<8x8xf32>,
    return
  }
  func.func @transform_0(%arg0: i32) -> (i32, i32) {
    %c0_i32 = arith.constant 0 : i32
    %c0_i32_0 = arith.constant 0 : i32
    return %arg0, %c0_i32 : i32, i32
  }
  func.func @transform_1(%arg0: i32) -> (i32, i32) {
    %c0_i32 = arith.constant 0 : i32
    %c0_i32_0 = arith.constant 0 : i32
    %c0_i32_1 = arith.constant 0 : i32
    return %c0_i32, %c0_i32_0 : i32, i32
  }
  func.func @transform_2(%arg0: i32) -> (i32, i32) {
    %c0_i32 = arith.constant 0 : i32
    %c0_i32_0 = arith.constant 0 : i32
    %c0_i32_1 = arith.constant 0 : i32
    return %c0_i32, %c0_i32_0 : i32, i32
  }
  func.func @transform_3(%arg0: i32) -> (i32, i32) {
    %c0_i32 = arith.constant 0 : i32
    %c0_i32_0 = arith.constant 0 : i32
    %c0_i32_1 = arith.constant 0 : i32
    return %c0_i32, %c0_i32_0 : i32, i32
  }
  func.func @transform_4(%arg0: i32) -> (i32, i32) {
    %c0_i32 = arith.constant 0 : i32
    %c0_i32_0 = arith.constant 0 : i32
    %c0_i32_1 = arith.constant 0 : i32
    return %c0_i32, %c0_i32_0 : i32, i32
  }
  func.func @transform_5(%arg0: i32) -> (i32, i32) {
    %c0_i32 = arith.constant 0 : i32
    %c0_i32_0 = arith.constant 0 : i32
    %c0_i32_1 = arith.constant 0 : i32
    return %c0_i32, %c0_i32_0 : i32, i32
  }
  func.func @transform_6(%arg0: i32) -> (i32, i32) {
    %c0_i32 = arith.constant 0 : i32
    %c0_i32_0 = arith.constant 0 : i32
    return %arg0, %c0_i32 : i32, i32
  }
}

</mosaic_0001>

<llo_original>
// kernel: dueling_qnet_forward.1
$region0: #{dueling_qnet_forward.1}
  #allocation0 [shape = 'u32[]', space=smem, size = 0x4, offset = 0x4, fixed_abs, tag = 'smem constant byte address 0x4 - core index']
  #allocation1 [shape = 'u32[144,128]{1,0:T(1,128)}', space=vmem, size = 0x12000, scoped, tag = 'internal scratch']
  %s0 = inlined_call_operand.hbm [shape: f32[8,405], index: 0, kind: input, shape index: {}]
  %s1 = inlined_call_operand.hbm [shape: bf16[405,256], index: 1, kind: input, shape index: {}]
  %s2 = inlined_call_operand.hbm [shape: bf16[256,128], index: 2, kind: input, shape index: {}]
  %s3 = inlined_call_operand.vmem [shape: bf16[128,128], index: 3, kind: input, shape index: {}]
  %s4 = inlined_call_operand.vmem [shape: bf16[128,8], index: 4, kind: input, shape index: {}]
  %s5 = inlined_call_operand.vmem [shape: f32[1,520], index: 5, kind: input, shape index: {}]
  %s6 = inlined_call_operand.hbm [shape: f32[8,8], index: 6, kind: output, shape index: {}]
  %s7 = sld [smem:[#allocation0]]
  $region46: #{dueling_qnet_forward.1} parent=0
    _
  %s9 = ssub.s32 1, %s7
  %s10 = scalar_select 0, %s9, %s7
  $region1: #{dueling_qnet_forward.1} parent=0
    #allocation2 [shape = 'u8[16384]{0}', space=vmem, size = 0x4000, scoped, tag = 'input window, operand 0, single buffered']
    #allocation3 [shape = 's32[1]{0}', space=sflag, size = 0x4, scoped, tag = 'scoped memory for dueling_qnet_forward.1']
    #allocation4 [shape = 's32[1]{0}', space=sflag, size = 0x4, scoped, tag = 'scoped memory for dueling_qnet_forward.1']
    #allocation5 [shape = 'u8[208896]{0}', space=vmem, size = 0x33000, scoped, tag = 'input window, operand 1, single buffered']
    #allocation6 [shape = 's32[1]{0}', space=sflag, size = 0x4, scoped, tag = 'scoped memory for dueling_qnet_forward.1']
    #allocation7 [shape = 'u8[65536]{0}', space=vmem, size = 0x10000, scoped, tag = 'input window, operand 2, single buffered']
    #allocation8 [shape = 'u8[4096]{0}', space=vmem, size = 0x1000, scoped, tag = 'output window, operand 0, single buffered']
    %11 = vsyncpa [#allocation3], 0
    %12 = vsyncpa [#allocation6], 0
    %13 = vsyncpa [#allocation4], 0
    // Predicated region
    $region2: #{dueling_qnet_forward.1} parent=1 // pred_check
      _
    $region3: #{dueling_qnet_forward.1} parent=1 // pred_check_branch
      %15 = sbr.rel (0) target = $region5
    $region4: #{dueling_qnet_forward.1} parent=1 // pred_region
      %s17 = ssub.s32 512, 512
      %18 = vsyncadd [#allocation3], %s17
      %s20 = sshll.u32 [#allocation2], 4
      %s21 = int_to_ptr.vmem [resolvable:$true] %s20
      %23 = dma.hbm_to_vmem [thread:$0]  %s0, 512, %s21, [#allocation3]
    $region5: #{dueling_qnet_forward.1} parent=1 // pred_fallthru
      _
    // Predicated region
    $region6: #{dueling_qnet_forward.1} parent=1 // pred_check
      _
    $region7: #{dueling_qnet_forward.1} parent=1 // pred_check_branch
      %25 = sbr.rel (0) target = $region9
    $region8: #{dueling_qnet_forward.1} parent=1 // pred_region
      %s27 = ssub.s32 6528, 6528
      %28 = vsyncadd [#allocation6], %s27
      %s29 = sshll.u32 [#allocation5], 4
      %s30 = int_to_ptr.vmem [resolvable:$true] %s29
      %35 = dma.hbm_to_vmem [thread:$0]  %s1, 6528, %s30, [#allocation6], 128, 128, 8
    $region9: #{dueling_qnet_forward.1} parent=1 // pred_fallthru
      _
    // Predicated region
    $region10: #{dueling_qnet_forward.1} parent=1 // pred_check
      _
    $region11: #{dueling_qnet_forward.1} parent=1 // pred_check_branch
      %37 = sbr.rel (0) target = $region13
    $region12: #{dueling_qnet_forward.1} parent=1 // pred_region
      %s39 = ssub.s32 2048, 2048
      %40 = vsyncadd [#allocation6], %s39
      %s41 = sshll.u32 [#allocation7], 4
      %s42 = int_to_ptr.vmem [resolvable:$true] %s41
      %47 = dma.hbm_to_vmem [thread:$0]  %s2, 2048, %s42, [#allocation6], 64, 64, 4
    $region13: #{dueling_qnet_forward.1} parent=1 // pred_fallthru
      _
    // Predicated region
    $region14: #{dueling_qnet_forward.1} parent=1 // pred_check
      _
    $region15: #{dueling_qnet_forward.1} parent=1 // pred_check_branch
      %49 = sbr.rel (0) target = $region17
    $region16: #{dueling_qnet_forward.1} parent=1 // pred_region
      _
    $region17: #{dueling_qnet_forward.1} parent=1 // pred_fallthru
      _
    // Predicated region
    $region18: #{dueling_qnet_forward.1} parent=1 // pred_check
      _
    $region19: #{dueling_qnet_forward.1} parent=1 // pred_check_branch
      %51 = sbr.rel (0) target = $region21
    $region20: #{dueling_qnet_forward.1} parent=1 // pred_region
      _
    $region21: #{dueling_qnet_forward.1} parent=1 // pred_fallthru
      _
    // Predicated region
    $region22: #{dueling_qnet_forward.1} parent=1 // pred_check
      _
    $region23: #{dueling_qnet_forward.1} parent=1 // pred_check_branch
      %53 = sbr.rel (0) target = $region25
    $region24: #{dueling_qnet_forward.1} parent=1 // pred_region
      _
    $region25: #{dueling_qnet_forward.1} parent=1 // pred_fallthru
      _
    // Predicated region
    $region26: #{dueling_qnet_forward.1} parent=1 // pred_check
      _
    $region27: #{dueling_qnet_forward.1} parent=1 // pred_check_branch
      %55 = sbr.rel (0) target = $region29
    $region28: #{dueling_qnet_forward.1} parent=1 // pred_region
      %56 = dma.done [#allocation3], 512
    $region29: #{dueling_qnet_forward.1} parent=1 // pred_fallthru
      _
    // Predicated region
    $region30: #{dueling_qnet_forward.1} parent=1 // pred_check
      _
    $region31: #{dueling_qnet_forward.1} parent=1 // pred_check_branch
      %58 = sbr.rel (0) target = $region33
    $region32: #{dueling_qnet_forward.1} parent=1 // pred_region
      %59 = dma.done [#allocation6], 6528
    $region33: #{dueling_qnet_forward.1} parent=1 // pred_fallthru
      _
    // Predicated region
    $region34: #{dueling_qnet_forward.1} parent=1 // pred_check
      _
    $region35: #{dueling_qnet_forward.1} parent=1 // pred_check_branch
      %61 = sbr.rel (0) target = $region37
    $region36: #{dueling_qnet_forward.1} parent=1 // pred_region
      %62 = dma.done [#allocation6], 2048
    $region37: #{dueling_qnet_forward.1} parent=1 // pred_fallthru
      _
    %v64 = vld [vmem:[%s5] sm:$0x3]
    %v65 = vld [vmem:[%s5 + $0x2] sm:$0x1]
    %v66 = vld [vmem:[%s5 + $0x3] sm:$0x1]
    %v67 = vld [vmem:[%s5 + $0x4] sm:$0x1]
    %v68 = vld [vmem:[#allocation2] sm:$0xff]
    %v69 = vld [vmem:[#allocation2 + $0x8] sm:$0xff]
    %v70 = vld [vmem:[#allocation2 + $0x10] sm:$0xff]
    %v71 = vld [vmem:[#allocation2 + $0x18] sm:$0xff]
    %v72 = vpack.c.bf16 %v68, %v68
    %v73 = vpack.c.bf16 %v69, %v69
    %v74 = vpack.c.bf16 %v70, %v70
    %v75 = vpack.c.bf16 %v71, %v71
    %v76 = vld [vmem:[#allocation5] sm:$0xff]
    %v77 = vld [vmem:[#allocation5 + $0x8] sm:$0xff]
    %v78 = vld [vmem:[#allocation5 + $0x10] sm:$0xff]
    %v79 = vld [vmem:[#allocation5 + $0x18] sm:$0xff]
    %v80 = vld [vmem:[#allocation5 + $0x20] sm:$0xff]
    %v81 = vld [vmem:[#allocation5 + $0x28] sm:$0xff]
    %v82 = vld [vmem:[#allocation5 + $0x30] sm:$0xff]
    %v83 = vld [vmem:[#allocation5 + $0x38] sm:$0xff]
    %v84 = vld [vmem:[#allocation5 + $0x40] sm:$0xff]
    %v85 = vld [vmem:[#allocation5 + $0x48] sm:$0xff]
    %v86 = vld [vmem:[#allocation5 + $0x50] sm:$0xff]
    %v87 = vld [vmem:[#allocation5 + $0x58] sm:$0xff]
    %v88 = vld [vmem:[#allocation5 + $0x60] sm:$0xff]
    %v89 = vld [vmem:[#allocation5 + $0x68] sm:$0xff]
    %v90 = vld [vmem:[#allocation5 + $0x70] sm:$0xff]
    %v91 = vld [vmem:[#allocation5 + $0x78] sm:$0xff]
    %v92 = vld [vmem:[#allocation5 + $0x80] sm:$0xff]
    %v93 = vld [vmem:[#allocation5 + $0x88] sm:$0xff]
    %v94 = vld [vmem:[#allocation5 + $0x90] sm:$0xff]
    %v95 = vld [vmem:[#allocation5 + $0x98] sm:$0xff]
    %v96 = vld [vmem:[#allocation5 + $0xa0] sm:$0xff]
    %v97 = vld [vmem:[#allocation5 + $0xa8] sm:$0xff]
    %v98 = vld [vmem:[#allocation5 + $0xb0] sm:$0xff]
    %v99 = vld [vmem:[#allocation5 + $0xb8] sm:$0xff]
    %v100 = vld [vmem:[#allocation5 + $0xc0] sm:$0xff]
    %v101 = vld [vmem:[#allocation5 + $0xc8] sm:$0xff]
    %v102 = vld [vmem:[#allocation5 + $0xd0] sm:$0xff]
    %v103 = vld [vmem:[#allocation5 + $0xd8] sm:$0xff]
    %v104 = vld [vmem:[#allocation5 + $0xe0] sm:$0xff]
    %v105 = vld [vmem:[#allocation5 + $0xe8] sm:$0xff]
    %v106 = vld [vmem:[#allocation5 + $0xf0] sm:$0xff]
    %v107 = vld [vmem:[#allocation5 + $0xf8] sm:$0xff]
    %v108 = vld [vmem:[#allocation5 + $0x100] sm:$0xff]
    %v109 = vld [vmem:[#allocation5 + $0x108] sm:$0xff]
    %v110 = vld [vmem:[#allocation5 + $0x110] sm:$0xff]
    %v111 = vld [vmem:[#allocation5 + $0x118] sm:$0xff]
    %v112 = vld [vmem:[#allocation5 + $0x120] sm:$0xff]
    %v113 = vld [vmem:[#allocation5 + $0x128] sm:$0xff]
    %v114 = vld [vmem:[#allocation5 + $0x130] sm:$0xff]
    %v115 = vld [vmem:[#allocation5 + $0x138] sm:$0xff]
    %v116 = vld [vmem:[#allocation5 + $0x140] sm:$0xff]
    %v117 = vld [vmem:[#allocation5 + $0x148] sm:$0xff]
    %v118 = vld [vmem:[#allocation5 + $0x150] sm:$0xff]
    %v119 = vld [vmem:[#allocation5 + $0x158] sm:$0xff]
    %v120 = vld [vmem:[#allocation5 + $0x160] sm:$0xff]
    %v121 = vld [vmem:[#allocation5 + $0x168] sm:$0xff]
    %v122 = vld [vmem:[#allocation5 + $0x170] sm:$0xff]
    %v123 = vld [vmem:[#allocation5 + $0x178] sm:$0xff]
    %v124 = vld [vmem:[#allocation5 + $0x180] sm:$0xff]
    %v125 = vld [vmem:[#allocation5 + $0x188] sm:$0xff]
    %v126 = vld [vmem:[#allocation5 + $0x190] sm:$0x77]
    %v128 = vlaneseq
    %v129 = vshrl.u32 %v128, 7
    %v130 = vsub.s32 0, %v129
    %v131 = vrot.slane %v64, %v130
    %v132 = vlaneseq
    %v133 = vshrl.u32 %v132, 7
    %v134 = vsub.s32 1, %v133
    %v135 = vrot.slane %v64, %v134
    %v189 = vunpack.c.l.b16 %v76
    %v190 = vunpack.c.h.b16 %v76
    %v191 = vunpack.c.l.b16 %v77
    %v192 = vunpack.c.h.b16 %v77
    %v193 = vunpack.c.l.b16 %v78
    %v194 = vunpack.c.h.b16 %v78
    %v195 = vunpack.c.l.b16 %v79
    %v196 = vunpack.c.h.b16 %v79
    %v197 = vunpack.c.l.b16 %v80
    %v198 = vunpack.c.h.b16 %v80
    %v199 = vunpack.c.l.b16 %v81
    %v200 = vunpack.c.h.b16 %v81
    %v201 = vunpack.c.l.b16 %v82
    %v202 = vunpack.c.h.b16 %v82
    %v203 = vunpack.c.l.b16 %v83
    %v204 = vunpack.c.h.b16 %v83
    %v205 = vunpack.c.l.b16 %v84
    %v206 = vunpack.c.h.b16 %v84
    %v207 = vunpack.c.l.b16 %v85
    %v208 = vunpack.c.h.b16 %v85
    %v209 = vunpack.c.l.b16 %v86
    %v210 = vunpack.c.h.b16 %v86
    %v211 = vunpack.c.l.b16 %v87
    %v212 = vunpack.c.h.b16 %v87
    %v213 = vunpack.c.l.b16 %v88
    %v214 = vunpack.c.h.b16 %v88
    %v215 = vunpack.c.l.b16 %v89
    %v216 = vunpack.c.h.b16 %v89
    %v217 = vunpack.c.l.b16 %v90
    %v218 = vunpack.c.h.b16 %v90
    %v219 = vunpack.c.l.b16 %v91
    %v220 = vunpack.c.h.b16 %v91
    %v221 = vunpack.c.l.b16 %v92
    %v222 = vunpack.c.h.b16 %v92
    %v223 = vunpack.c.l.b16 %v93
    %v224 = vunpack.c.h.b16 %v93
    %v225 = vunpack.c.l.b16 %v94
    %v226 = vunpack.c.h.b16 %v94
    %v227 = vunpack.c.l.b16 %v95
    %v228 = vunpack.c.h.b16 %v95
    %v229 = vunpack.c.l.b16 %v96
    %v230 = vunpack.c.h.b16 %v96
    %v231 = vunpack.c.l.b16 %v97
    %v232 = vunpack.c.h.b16 %v97
    %v233 = vunpack.c.l.b16 %v98
    %v234 = vunpack.c.h.b16 %v98
    %v235 = vunpack.c.l.b16 %v99
    %v236 = vunpack.c.h.b16 %v99
    %v237 = vunpack.c.l.b16 %v100
    %v238 = vunpack.c.h.b16 %v100
    %v239 = vunpack.c.l.b16 %v101
    %v240 = vunpack.c.h.b16 %v101
    %v241 = vunpack.c.l.b16 %v102
    %v242 = vunpack.c.h.b16 %v102
    %v243 = vunpack.c.l.b16 %v103
    %v244 = vunpack.c.h.b16 %v103
    %v245 = vunpack.c.l.b16 %v104
    %v246 = vunpack.c.h.b16 %v104
    %v247 = vunpack.c.l.b16 %v105
    %v248 = vunpack.c.h.b16 %v105
    %v249 = vunpack.c.l.b16 %v106
    %v250 = vunpack.c.h.b16 %v106
    %v251 = vunpack.c.l.b16 %v107
    %v252 = vunpack.c.h.b16 %v107
    %v253 = vunpack.c.l.b16 %v108
    %v254 = vunpack.c.h.b16 %v108
    %v255 = vunpack.c.l.b16 %v109
    %v256 = vunpack.c.h.b16 %v109
    %v257 = vunpack.c.l.b16 %v110
    %v258 = vunpack.c.h.b16 %v110
    %v259 = vunpack.c.l.b16 %v111
    %v260 = vunpack.c.h.b16 %v111
    %v261 = vunpack.c.l.b16 %v112
    %v262 = vunpack.c.h.b16 %v112
    %v263 = vunpack.c.l.b16 %v113
    %v264 = vunpack.c.h.b16 %v113
    %v265 = vunpack.c.l.b16 %v114
    %v266 = vunpack.c.h.b16 %v114
    %v267 = vunpack.c.l.b16 %v115
    %v268 = vunpack.c.h.b16 %v115
    %v269 = vunpack.c.l.b16 %v116
    %v270 = vunpack.c.h.b16 %v116
    %v271 = vunpack.c.l.b16 %v117
    %v272 = vunpack.c.h.b16 %v117
    %v273 = vunpack.c.l.b16 %v118
    %v274 = vunpack.c.h.b16 %v118
    %v275 = vunpack.c.l.b16 %v119
    %v276 = vunpack.c.h.b16 %v119
    %v277 = vunpack.c.l.b16 %v120
    %v278 = vunpack.c.h.b16 %v120
    %v279 = vunpack.c.l.b16 %v121
    %v280 = vunpack.c.h.b16 %v121
    %v281 = vunpack.c.l.b16 %v122
    %v282 = vunpack.c.h.b16 %v122
    %v283 = vunpack.c.l.b16 %v123
    %v284 = vunpack.c.h.b16 %v123
    %v285 = vunpack.c.l.b16 %v124
    %v286 = vunpack.c.h.b16 %v124
    %v287 = vunpack.c.l.b16 %v125
    %v288 = vunpack.c.h.b16 %v125
    %v289 = vunpack.c.l.b16 %v126
    %v290 = vunpack.c.h.b16 %v126
    %v291 = vpack.c.b16 %v191, %v189
    %v292 = vpack.c.b16 %v192, %v190
    %v293 = vpack.c.b16 %v195, %v193
    %v294 = vpack.c.b16 %v196, %v194
    %v295 = vpack.c.b16 %v199, %v197
    %v296 = vpack.c.b16 %v200, %v198
    %v297 = vpack.c.b16 %v203, %v201
    %v298 = vpack.c.b16 %v204, %v202
    %v299 = vpack.c.b16 %v207, %v205
    %v300 = vpack.c.b16 %v208, %v206
    %v301 = vpack.c.b16 %v211, %v209
    %v302 = vpack.c.b16 %v212, %v210
    %v303 = vpack.c.b16 %v215, %v213
    %v304 = vpack.c.b16 %v216, %v214
    %v305 = vpack.c.b16 %v219, %v217
    %v306 = vpack.c.b16 %v220, %v218
    %v307 = vpack.c.b16 %v223, %v221
    %v308 = vpack.c.b16 %v224, %v222
    %v309 = vpack.c.b16 %v227, %v225
    %v310 = vpack.c.b16 %v228, %v226
    %v311 = vpack.c.b16 %v231, %v229
    %v312 = vpack.c.b16 %v232, %v230
    %v313 = vpack.c.b16 %v235, %v233
    %v314 = vpack.c.b16 %v236, %v234
    %v315 = vpack.c.b16 %v239, %v237
    %v316 = vpack.c.b16 %v240, %v238
    %v317 = vpack.c.b16 %v243, %v241
    %v318 = vpack.c.b16 %v244, %v242
    %v319 = vpack.c.b16 %v247, %v245
    %v320 = vpack.c.b16 %v248, %v246
    %v321 = vpack.c.b16 %v251, %v249
    %v322 = vpack.c.b16 %v252, %v250
    %v323 = vpack.c.b16 %v255, %v253
    %v324 = vpack.c.b16 %v256, %v254
    %v325 = vpack.c.b16 %v259, %v257
    %v326 = vpack.c.b16 %v260, %v258
    %v327 = vpack.c.b16 %v263, %v261
    %v328 = vpack.c.b16 %v264, %v262
    %v329 = vpack.c.b16 %v267, %v265
    %v330 = vpack.c.b16 %v268, %v266
    %v331 = vpack.c.b16 %v271, %v269
    %v332 = vpack.c.b16 %v272, %v270
    %v333 = vpack.c.b16 %v275, %v273
    %v334 = vpack.c.b16 %v276, %v274
    %v335 = vpack.c.b16 %v279, %v277
    %v336 = vpack.c.b16 %v280, %v278
    %v337 = vpack.c.b16 %v283, %v281
    %v338 = vpack.c.b16 %v284, %v282
    %v339 = vpack.c.b16 %v287, %v285
    %v340 = vpack.c.b16 %v288, %v286
    %v341 = vpack.c.b16 %v289, %v289
    %v342 = vpack.c.b16 %v290, %v290
    %vm393 = vcmask 171008
    %v395 = vsel %vm393, %v75, 0
    %vm397 = vcmask 1041408
    %vm398 = vcmask 1042432
    %v399 = vsel %vm397, 4294967295, 65535
    %v400 = vsel %vm398, %v399, 0
    %v402 = vand.u32 %v341, %v400
    %v405 = vand.u32 %v342, %v400
    %407 = vmatprep.subr.bf16.mxu0 %v292
    %408 = vmatpush1.bf16.msra.mxu0 %v291
    %409 = vmatprep.subr.bf16.mxu0 %v294
    %410 = vmatpush1.bf16.msra.mxu0 %v293
    %411 = vmatprep.subr.bf16.mxu0 %v296
    %412 = vmatpush1.bf16.msra.mxu0 %v295
    %413 = vmatprep.subr.bf16.mxu0 %v298
    %414 = vmatpush1.bf16.msra.mxu0 %v297
    %415 = vmatprep.subr.bf16.mxu0 %v300
    %416 = vmatpush1.bf16.msra.mxu0 %v299
    %417 = vmatprep.subr.bf16.mxu0 %v302
    %418 = vmatpush1.bf16.msra.mxu0 %v301
    %419 = vmatprep.subr.bf16.mxu0 %v304
    %420 = vmatpush1.bf16.msra.mxu0 %v303
    %421 = vmatprep.subr.bf16.mxu0 %v306
    %422 = vmatpush1.bf16.msra.mxu0 %v305
    %423 = vmatprep.subr.bf16.mxu0 %v308
    %424 = vmatpush1.bf16.msra.mxu0 %v307
    %425 = vmatprep.subr.bf16.mxu0 %v310
    %426 = vmatpush1.bf16.msra.mxu0 %v309
    %427 = vmatprep.subr.bf16.mxu0 %v312
    %428 = vmatpush1.bf16.msra.mxu0 %v311
    %429 = vmatprep.subr.bf16.mxu0 %v314
    %430 = vmatpush1.bf16.msra.mxu0 %v313
    %431 = vmatprep.subr.bf16.mxu0 %v316
    %432 = vmatpush1.bf16.msra.mxu0 %v315
    %433 = vmatprep.subr.bf16.mxu0 %v318
    %434 = vmatpush1.bf16.msra.mxu0 %v317
    %435 = vmatprep.subr.bf16.mxu0 %v320
    %436 = vmatpush1.bf16.msra.mxu0 %v319
    %437 = vmatprep.subr.bf16.mxu0 %v322
    %438 = vmatpush1.bf16.msra.mxu0 %v321
    %439 = vmatprep.mubr.bf16.mxu0 %v73
    %440 = vmatmul.mubr.bf16.gmra.mrb[0].mxu0 %v72
    %v441 = vpop.f32.mrb[0].mxu0
    %v442 = vadd.f32 %v131, %v441
    %v443 = vpop.f32.mrb[0].mxu0
    %v444 = vadd.f32 %v135, %v443
    %v445 = vpop.f32.mrb[0].mxu0
    %v446 = vpop.f32.mrb[0].mxu0
    %447 = vdwg.mxu0
    %448 = vmatprep.subr.bf16.mxu0 %v324
    %449 = vmatpush1.bf16.msra.mxu0 %v323
    %450 = vmatprep.subr.bf16.mxu0 %v326
    %451 = vmatpush1.bf16.msra.mxu0 %v325
    %452 = vmatprep.subr.bf16.mxu0 %v328
    %453 = vmatpush1.bf16.msra.mxu0 %v327
    %454 = vmatprep.subr.bf16.mxu0 %v330
    %455 = vmatpush1.bf16.msra.mxu0 %v329
    %456 = vmatprep.subr.bf16.mxu0 %v332
    %457 = vmatpush1.bf16.msra.mxu0 %v331
    %458 = vmatprep.subr.bf16.mxu0 %v334
    %459 = vmatpush1.bf16.msra.mxu0 %v333
    %460 = vmatprep.subr.bf16.mxu0 %v336
    %461 = vmatpush1.bf16.msra.mxu0 %v335
    %462 = vmatprep.subr.bf16.mxu0 %v338
    %463 = vmatpush1.bf16.msra.mxu0 %v337
    %464 = vmatprep.subr.bf16.mxu0 %v340
    %465 = vmatpush1.bf16.msra.mxu0 %v339
    %466 = vmatprep.subr.bf16.mxu0 %v405
    %467 = vmatpush1.bf16.msra.mxu0 %v402
    %468 = vmatprep.subr.bf16.mxu0 0
    %469 = vmatpush1.bf16.msra.mxu0 0
    %470 = vmatprep.subr.bf16.mxu0 0
    %471 = vmatpush1.bf16.msra.mxu0 0
    %472 = vmatprep.subr.bf16.mxu0 0
    %473 = vmatpush1.bf16.msra.mxu0 0
    %474 = vmatprep.subr.bf16.mxu0 0
    %475 = vmatpush1.bf16.msra.mxu0 0
    %476 = vmatprep.subr.bf16.mxu0 0
    %477 = vmatpush1.bf16.msra.mxu0 0
    %478 = vmatprep.subr.bf16.mxu0 0
    %479 = vmatpush1.bf16.msra.mxu0 0
    %480 = vmatprep.mubr.bf16.mxu0 %v395
    %481 = vmatmul.mubr.bf16.gmra.mrb[0].mxu0 %v74
    %v482 = vpop.f32.mrb[0].mxu0
    %v483 = vadd.f32 %v442, %v482
    %v484 = vpop.f32.mrb[0].mxu0
    %v485 = vadd.f32 %v444, %v484
    %v486 = vpop.f32.mrb[0].mxu0
    %v487 = vpop.f32.mrb[0].mxu0
    %488 = vdwg.mxu0
    %v489 = vmax.f32 %v483, 0.0
    %v490 = vmax.f32 %v485, 0.0
    %v491 = vpack.c.bf16 %v489, %v489
    %v492 = vpack.c.bf16 %v490, %v490
    %v493 = vld [vmem:[#allocation7] sm:$0xf]
    %v494 = vld [vmem:[#allocation7 + $0x4] sm:$0xf]
    %v495 = vld [vmem:[#allocation7 + $0x8] sm:$0xf]
    %v496 = vld [vmem:[#allocation7 + $0xc] sm:$0xf]
    %v497 = vld [vmem:[#allocation7 + $0x10] sm:$0xf]
    %v498 = vld [vmem:[#allocation7 + $0x14] sm:$0xf]
    %v499 = vld [vmem:[#allocation7 + $0x18] sm:$0xf]
    %v500 = vld [vmem:[#allocation7 + $0x1c] sm:$0xf]
    %v501 = vld [vmem:[#allocation7 + $0x20] sm:$0xf]
    %v502 = vld [vmem:[#allocation7 + $0x24] sm:$0xf]
    %v503 = vld [vmem:[#allocation7 + $0x28] sm:$0xf]
    %v504 = vld [vmem:[#allocation7 + $0x2c] sm:$0xf]
    %v505 = vld [vmem:[#allocation7 + $0x30] sm:$0xf]
    %v506 = vld [vmem:[#allocation7 + $0x34] sm:$0xf]
    %v507 = vld [vmem:[#allocation7 + $0x38] sm:$0xf]
    %v508 = vld [vmem:[#allocation7 + $0x3c] sm:$0xf]
    %v509 = vld [vmem:[#allocation7 + $0x40] sm:$0xf]
    %v510 = vld [vmem:[#allocation7 + $0x44] sm:$0xf]
    %v511 = vld [vmem:[#allocation7 + $0x48] sm:$0xf]
    %v512 = vld [vmem:[#allocation7 + $0x4c] sm:$0xf]
    %v513 = vld [vmem:[#allocation7 + $0x50] sm:$0xf]
    %v514 = vld [vmem:[#allocation7 + $0x54] sm:$0xf]
    %v515 = vld [vmem:[#allocation7 + $0x58] sm:$0xf]
    %v516 = vld [vmem:[#allocation7 + $0x5c] sm:$0xf]
    %v517 = vld [vmem:[#allocation7 + $0x60] sm:$0xf]
    %v518 = vld [vmem:[#allocation7 + $0x64] sm:$0xf]
    %v519 = vld [vmem:[#allocation7 + $0x68] sm:$0xf]
    %v520 = vld [vmem:[#allocation7 + $0x6c] sm:$0xf]
    %v521 = vld [vmem:[#allocation7 + $0x70] sm:$0xf]
    %v522 = vld [vmem:[#allocation7 + $0x74] sm:$0xf]
    %v523 = vld [vmem:[#allocation7 + $0x78] sm:$0xf]
    %v524 = vld [vmem:[#allocation7 + $0x7c] sm:$0xf]
    %v526 = vlaneseq
    %v527 = vshrl.u32 %v526, 7
    %v528 = vsub.s32 0, %v527
    %v529 = vrot.slane %v65, %v528
    %v563 = vunpack.c.l.b16 %v493
    %v564 = vunpack.c.l.b16 %v494
    %v565 = vunpack.c.l.b16 %v495
    %v566 = vunpack.c.l.b16 %v496
    %v567 = vunpack.c.l.b16 %v497
    %v568 = vunpack.c.l.b16 %v498
    %v569 = vunpack.c.l.b16 %v499
    %v570 = vunpack.c.l.b16 %v500
    %v571 = vunpack.c.l.b16 %v501
    %v572 = vunpack.c.l.b16 %v502
    %v573 = vunpack.c.l.b16 %v503
    %v574 = vunpack.c.l.b16 %v504
    %v575 = vunpack.c.l.b16 %v505
    %v576 = vunpack.c.l.b16 %v506
    %v577 = vunpack.c.l.b16 %v507
    %v578 = vunpack.c.l.b16 %v508
    %v579 = vunpack.c.l.b16 %v509
    %v580 = vunpack.c.l.b16 %v510
    %v581 = vunpack.c.l.b16 %v511
    %v582 = vunpack.c.l.b16 %v512
    %v583 = vunpack.c.l.b16 %v513
    %v584 = vunpack.c.l.b16 %v514
    %v585 = vunpack.c.l.b16 %v515
    %v586 = vunpack.c.l.b16 %v516
    %v587 = vunpack.c.l.b16 %v517
    %v588 = vunpack.c.l.b16 %v518
    %v589 = vunpack.c.l.b16 %v519
    %v590 = vunpack.c.l.b16 %v520
    %v591 = vunpack.c.l.b16 %v521
    %v592 = vunpack.c.l.b16 %v522
    %v593 = vunpack.c.l.b16 %v523
    %v594 = vunpack.c.l.b16 %v524
    %v595 = vpack.c.b16 %v564, %v563
    %v596 = vpack.c.b16 %v566, %v565
    %v597 = vpack.c.b16 %v568, %v567
    %v598 = vpack.c.b16 %v570, %v569
    %v599 = vpack.c.b16 %v572, %v571
    %v600 = vpack.c.b16 %v574, %v573
    %v601 = vpack.c.b16 %v576, %v575
    %v602 = vpack.c.b16 %v578, %v577
    %v603 = vpack.c.b16 %v580, %v579
    %v604 = vpack.c.b16 %v582, %v581
    %v605 = vpack.c.b16 %v584, %v583
    %v606 = vpack.c.b16 %v586, %v585
    %v607 = vpack.c.b16 %v588, %v587
    %v608 = vpack.c.b16 %v590, %v589
    %v609 = vpack.c.b16 %v592, %v591
    %v610 = vpack.c.b16 %v594, %v593
    %627 = vmatprep.subr.bf16.mxu0 0
    %628 = vmatpush1.bf16.msra.mxu0 %v595
    %629 = vmatprep.subr.bf16.mxu0 0
    %630 = vmatpush1.bf16.msra.mxu0 %v596
    %631 = vmatprep.subr.bf16.mxu0 0
    %632 = vmatpush1.bf16.msra.mxu0 %v597
    %633 = vmatprep.subr.bf16.mxu0 0
    %634 = vmatpush1.bf16.msra.mxu0 %v598
    %635 = vmatprep.subr.bf16.mxu0 0
    %636 = vmatpush1.bf16.msra.mxu0 %v599
    %637 = vmatprep.subr.bf16.mxu0 0
    %638 = vmatpush1.bf16.msra.mxu0 %v600
    %639 = vmatprep.subr.bf16.mxu0 0
    %640 = vmatpush1.bf16.msra.mxu0 %v601
    %641 = vmatprep.subr.bf16.mxu0 0
    %642 = vmatpush1.bf16.msra.mxu0 %v602
    %643 = vmatprep.subr.bf16.mxu0 0
    %644 = vmatpush1.bf16.msra.mxu0 %v603
    %645 = vmatprep.subr.bf16.mxu0 0
    %646 = vmatpush1.bf16.msra.mxu0 %v604
    %647 = vmatprep.subr.bf16.mxu0 0
    %648 = vmatpush1.bf16.msra.mxu0 %v605
    %649 = vmatprep.subr.bf16.mxu0 0
    %650 = vmatpush1.bf16.msra.mxu0 %v606
    %651 = vmatprep.subr.bf16.mxu0 0
    %652 = vmatpush1.bf16.msra.mxu0 %v607
    %653 = vmatprep.subr.bf16.mxu0 0
    %654 = vmatpush1.bf16.msra.mxu0 %v608
    %655 = vmatprep.subr.bf16.mxu0 0
    %656 = vmatpush1.bf16.msra.mxu0 %v609
    %657 = vmatprep.subr.bf16.mxu0 0
    %658 = vmatpush1.bf16.msra.mxu0 %v610
    %659 = vmatprep.mubr.bf16.mxu0 %v492
    %660 = vmatmul.mubr.bf16.gmra.mrb[0].mxu0 %v491
    %v661 = vpop.f32.mrb[0].mxu0
    %v662 = vadd.f32 %v529, %v661
    %v663 = vpop.f32.mrb[0].mxu0
    %v664 = vpop.f32.mrb[0].mxu0
    %v665 = vpop.f32.mrb[0].mxu0
    %666 = vdwg.mxu0
    %v667 = vmax.f32 %v662, 0.0
    %v668 = vpack.c.bf16 %v667, %v667
    %v669 = vld [vmem:[%s3] sm:$0xf]
    %v670 = vld [vmem:[%s3 + $0x4] sm:$0xf]
    %v671 = vld [vmem:[%s3 + $0x8] sm:$0xf]
    %v672 = vld [vmem:[%s3 + $0xc] sm:$0xf]
    %v673 = vld [vmem:[%s3 + $0x10] sm:$0xf]
    %v674 = vld [vmem:[%s3 + $0x14] sm:$0xf]
    %v675 = vld [vmem:[%s3 + $0x18] sm:$0xf]
    %v676 = vld [vmem:[%s3 + $0x1c] sm:$0xf]
    %v677 = vld [vmem:[%s3 + $0x20] sm:$0xf]
    %v678 = vld [vmem:[%s3 + $0x24] sm:$0xf]
    %v679 = vld [vmem:[%s3 + $0x28] sm:$0xf]
    %v680 = vld [vmem:[%s3 + $0x2c] sm:$0xf]
    %v681 = vld [vmem:[%s3 + $0x30] sm:$0xf]
    %v682 = vld [vmem:[%s3 + $0x34] sm:$0xf]
    %v683 = vld [vmem:[%s3 + $0x38] sm:$0xf]
    %v684 = vld [vmem:[%s3 + $0x3c] sm:$0xf]
    %v686 = vlaneseq
    %v687 = vshrl.u32 %v686, 7
    %v688 = vsub.s32 0, %v687
    %v689 = vrot.slane %v66, %v688
    %v707 = vunpack.c.l.b16 %v669
    %v708 = vunpack.c.l.b16 %v670
    %v709 = vunpack.c.l.b16 %v671
    %v710 = vunpack.c.l.b16 %v672
    %v711 = vunpack.c.l.b16 %v673
    %v712 = vunpack.c.l.b16 %v674
    %v713 = vunpack.c.l.b16 %v675
    %v714 = vunpack.c.l.b16 %v676
    %v715 = vunpack.c.l.b16 %v677
    %v716 = vunpack.c.l.b16 %v678
    %v717 = vunpack.c.l.b16 %v679
    %v718 = vunpack.c.l.b16 %v680
    %v719 = vunpack.c.l.b16 %v681
    %v720 = vunpack.c.l.b16 %v682
    %v721 = vunpack.c.l.b16 %v683
    %v722 = vunpack.c.l.b16 %v684
    %v723 = vpack.c.b16 %v708, %v707
    %v724 = vpack.c.b16 %v710, %v709
    %v725 = vpack.c.b16 %v712, %v711
    %v726 = vpack.c.b16 %v714, %v713
    %v727 = vpack.c.b16 %v716, %v715
    %v728 = vpack.c.b16 %v718, %v717
    %v729 = vpack.c.b16 %v720, %v719
    %v730 = vpack.c.b16 %v722, %v721
    %739 = vmatprep.subr.bf16.mxu0 0
    %740 = vmatpush1.bf16.msra.mxu0 %v723
    %741 = vmatprep.subr.bf16.mxu0 0
    %742 = vmatpush1.bf16.msra.mxu0 %v724
    %743 = vmatprep.subr.bf16.mxu0 0
    %744 = vmatpush1.bf16.msra.mxu0 %v725
    %745 = vmatprep.subr.bf16.mxu0 0
    %746 = vmatpush1.bf16.msra.mxu0 %v726
    %747 = vmatprep.subr.bf16.mxu0 0
    %748 = vmatpush1.bf16.msra.mxu0 %v727
    %749 = vmatprep.subr.bf16.mxu0 0
    %750 = vmatpush1.bf16.msra.mxu0 %v728
    %751 = vmatprep.subr.bf16.mxu0 0
    %752 = vmatpush1.bf16.msra.mxu0 %v729
    %753 = vmatprep.subr.bf16.mxu0 0
    %754 = vmatpush1.bf16.msra.mxu0 %v730
    %755 = vmatprep.subr.bf16.mxu0 0
    %756 = vmatpush1.bf16.msra.mxu0 0
    %757 = vmatprep.subr.bf16.mxu0 0
    %758 = vmatpush1.bf16.msra.mxu0 0
    %759 = vmatprep.subr.bf16.mxu0 0
    %760 = vmatpush1.bf16.msra.mxu0 0
    %761 = vmatprep.subr.bf16.mxu0 0
    %762 = vmatpush1.bf16.msra.mxu0 0
    %763 = vmatprep.subr.bf16.mxu0 0
    %764 = vmatpush1.bf16.msra.mxu0 0
    %765 = vmatprep.subr.bf16.mxu0 0
    %766 = vmatpush1.bf16.msra.mxu0 0
    %767 = vmatprep.subr.bf16.mxu0 0
    %768 = vmatpush1.bf16.msra.mxu0 0
    %769 = vmatprep.subr.bf16.mxu0 0
    %770 = vmatpush1.bf16.msra.mxu0 0
    %771 = vmatprep.mubr.bf16.mxu0 0
    %772 = vmatmul.mubr.bf16.gmra.mrb[0].mxu0 %v668
    %v773 = vpop.f32.mrb[0].mxu0
    %v774 = vadd.f32 %v689, %v773
    %v775 = vpop.f32.mrb[0].mxu0
    %v776 = vpop.f32.mrb[0].mxu0
    %v777 = vpop.f32.mrb[0].mxu0
    %778 = vdwg.mxu0
    %v779 = vmax.f32 %v774, 0.0
    %v780 = vpack.c.bf16 %v779, %v779
    %v781 = vld [vmem:[%s4] sm:$0xf]
    %v782 = vld [vmem:[%s4 + $0x4] sm:$0xf]
    %v783 = vld [vmem:[%s4 + $0x8] sm:$0xf]
    %v784 = vld [vmem:[%s4 + $0xc] sm:$0xf]
    %v785 = vld [vmem:[%s4 + $0x10] sm:$0xf]
    %v786 = vld [vmem:[%s4 + $0x14] sm:$0xf]
    %v787 = vld [vmem:[%s4 + $0x18] sm:$0xf]
    %v788 = vld [vmem:[%s4 + $0x1c] sm:$0xf]
    %v789 = vld [vmem:[%s4 + $0x20] sm:$0xf]
    %v790 = vld [vmem:[%s4 + $0x24] sm:$0xf]
    %v791 = vld [vmem:[%s4 + $0x28] sm:$0xf]
    %v792 = vld [vmem:[%s4 + $0x2c] sm:$0xf]
    %v793 = vld [vmem:[%s4 + $0x30] sm:$0xf]
    %v794 = vld [vmem:[%s4 + $0x34] sm:$0xf]
    %v795 = vld [vmem:[%s4 + $0x38] sm:$0xf]
    %v796 = vld [vmem:[%s4 + $0x3c] sm:$0xf]
    %v798 = vlaneseq
    %v799 = vshrl.u32 %v798, 7
    %v800 = vsub.s32 0, %v799
    %v801 = vrot.slane %v67, %v800
    %v819 = vunpack.c.l.b16 %v781
    %v820 = vunpack.c.l.b16 %v782
    %v821 = vunpack.c.l.b16 %v783
    %v822 = vunpack.c.l.b16 %v784
    %v823 = vunpack.c.l.b16 %v785
    %v824 = vunpack.c.l.b16 %v786
    %v825 = vunpack.c.l.b16 %v787
    %v826 = vunpack.c.l.b16 %v788
    %v827 = vunpack.c.l.b16 %v789
    %v828 = vunpack.c.l.b16 %v790
    %v829 = vunpack.c.l.b16 %v791
    %v830 = vunpack.c.l.b16 %v792
    %v831 = vunpack.c.l.b16 %v793
    %v832 = vunpack.c.l.b16 %v794
    %v833 = vunpack.c.l.b16 %v795
    %v834 = vunpack.c.l.b16 %v796
    %v835 = vpack.c.b16 %v820, %v819
    %v836 = vpack.c.b16 %v822, %v821
    %v837 = vpack.c.b16 %v824, %v823
    %v838 = vpack.c.b16 %v826, %v825
    %v839 = vpack.c.b16 %v828, %v827
    %v840 = vpack.c.b16 %v830, %v829
    %v841 = vpack.c.b16 %v832, %v831
    %v842 = vpack.c.b16 %v834, %v833
    %851 = vmatprep.subr.bf16.mxu0 0
    %852 = vmatpush1.bf16.msra.mxu0 %v835
    %853 = vmatprep.subr.bf16.mxu0 0
    %854 = vmatpush1.bf16.msra.mxu0 %v836
    %855 = vmatprep.subr.bf16.mxu0 0
    %856 = vmatpush1.bf16.msra.mxu0 %v837
    %857 = vmatprep.subr.bf16.mxu0 0
    %858 = vmatpush1.bf16.msra.mxu0 %v838
    %859 = vmatprep.subr.bf16.mxu0 0
    %860 = vmatpush1.bf16.msra.mxu0 %v839
    %861 = vmatprep.subr.bf16.mxu0 0
    %862 = vmatpush1.bf16.msra.mxu0 %v840
    %863 = vmatprep.subr.bf16.mxu0 0
    %864 = vmatpush1.bf16.msra.mxu0 %v841
    %865 = vmatprep.subr.bf16.mxu0 0
    %866 = vmatpush1.bf16.msra.mxu0 %v842
    %867 = vmatprep.subr.bf16.mxu0 0
    %868 = vmatpush1.bf16.msra.mxu0 0
    %869 = vmatprep.subr.bf16.mxu0 0
    %870 = vmatpush1.bf16.msra.mxu0 0
    %871 = vmatprep.subr.bf16.mxu0 0
    %872 = vmatpush1.bf16.msra.mxu0 0
    %873 = vmatprep.subr.bf16.mxu0 0
    %874 = vmatpush1.bf16.msra.mxu0 0
    %875 = vmatprep.subr.bf16.mxu0 0
    %876 = vmatpush1.bf16.msra.mxu0 0
    %877 = vmatprep.subr.bf16.mxu0 0
    %878 = vmatpush1.bf16.msra.mxu0 0
    %879 = vmatprep.subr.bf16.mxu0 0
    %880 = vmatpush1.bf16.msra.mxu0 0
    %881 = vmatprep.subr.bf16.mxu0 0
    %882 = vmatpush1.bf16.msra.mxu0 0
    %883 = vmatprep.mubr.bf16.mxu0 0
    %884 = vmatmul.mubr.bf16.gmra.mrb[0].mxu0 %v780
    %v885 = vpop.f32.mrb[0].mxu0
    %v886 = vadd.f32 %v801, %v885
    %v887 = vpop.f32.mrb[0].mxu0
    %v888 = vpop.f32.mrb[0].mxu0
    %v889 = vpop.f32.mrb[0].mxu0
    %890 = vdwg.mxu0
    %vm891 = vcmask 64512
    %892 = vst.msk [vmem:[#allocation8] sm:$0xff] %vm891, %v886
    // Predicated region
    $region38: #{dueling_qnet_forward.1} parent=1 // pred_check
      _
    $region39: #{dueling_qnet_forward.1} parent=1 // pred_check_branch
      %894 = sbr.rel (0) target = $region41
    $region40: #{dueling_qnet_forward.1} parent=1 // pred_region
      %s896 = ssub.s32 128, 128
      %897 = vsyncadd [#allocation4], %s896
      %s899 = sshll.u32 [#allocation8], 4
      %s900 = int_to_ptr.vmem [resolvable:$true] %s899
      %902 = dma.vmem_to_hbm [thread:$0]  %s900, 128, %s6, [#allocation4]
    $region41: #{dueling_qnet_forward.1} parent=1 // pred_fallthru
      _
    // Predicated region
    $region42: #{dueling_qnet_forward.1} parent=1 // pred_check
      _
    $region43: #{dueling_qnet_forward.1} parent=1 // pred_check_branch
      %904 = sbr.rel (0) target = $region45
    $region44: #{dueling_qnet_forward.1} parent=1 // pred_region
      %905 = dma.done [#allocation4], 128
    $region45: #{dueling_qnet_forward.1} parent=1 // pred_fallthru
      _
    %906 = vsyncpa [#allocation3], 1
    %907 = vsyncpa [#allocation6], 1
    %908 = vsyncpa [#allocation4], 1

</llo_original>
